<compile_context>
chip_gen: v7x
topology: tpu7x:2x2x1
jax: 0.10.0
libtpu: 0.0.40
codegen_flags: <defaults>
</compile_context>

<pallas_src>
import functools
import numpy as np
import jax
import jax.numpy as jnp
from jax.experimental import pallas as pl
from jax.experimental.pallas import tpu as pltpu


# ----------------------------------------------------------------------------
# Parameter construction (deterministic re-implementation of SymStanH.__init__)
# ----------------------------------------------------------------------------
def build_symstanh_params(num_sigmoids, extrema=5):
    massimo = float(extrema)
    range_num = np.arange(0.5, massimo, dtype=np.float32)       # [0.5, ..., extrema-0.5]
    if num_sigmoids == 0:
        b = range_num.copy()
        w = np.ones(len(range_num), dtype=np.float32)
    else:
        jump = len(range_num) / num_sigmoids
        c = jump
        b = np.arange(jump / 2, massimo + jump / 2, c, dtype=np.float32)
        w = np.zeros(num_sigmoids, dtype=np.float32) + jump
    # update_weights(): symmetric extension
    sym_w = np.concatenate([w[::-1], w]).astype(np.float32)       # (2L,)
    sym_b = np.concatenate([(-b)[::-1], b]).astype(np.float32)    # (2L,)
    # forward() sorts sym_b (torch.sort(self.sym_b)[0]); sym_w is NOT reordered.
    sorted_b = np.sort(sym_b).astype(np.float32)
    return sym_w, sorted_b                                        # numpy (host) params


# ----------------------------------------------------------------------------
# Pallas kernel: elementwise sum of K scaled tanh terms (VPU + EUP only)
# ----------------------------------------------------------------------------
def _stanh_kernel(x_ref, o_ref, *, beta, w_half, beta_b):
    # x_ref, o_ref : (BR, C) lane-dense tile in VMEM
    # w_half, beta_b : Python float tuples baked at trace time (inference-only).
    x = x_ref[...].astype(jnp.float32)
    bx = beta * x                                   # hoisted out of the K-term loop
    acc = w_half[0] * jnp.tanh(bx - beta_b[0])
    for wk, bk in zip(w_half[1:], beta_b[1:]):      # small static K -> unrolled
        acc = acc + wk * jnp.tanh(bx - bk)
    o_ref[...] = acc.astype(o_ref.dtype)


def _choose_slab(total, max_lanes=2048, min_lanes=128):
    """Pick a lane-dense slab width C (multiple of 128) and row count M."""
    c = max_lanes
    while c > min_lanes and total < 8 * c:
        c //= 2
    c = max(c, min_lanes)
    m = (total + c - 1) // c
    return m, c


def symstanh_forward(x, sym_w, sorted_b, beta, *, block_rows=256, max_lanes=2048):
    """x: (B, 1, N) -> (B, 1, N), identical semantics to SymStanH.forward(x)."""
    assert x.ndim == 3 and x.shape[1] == 1, "expected (B, 1, N), as in the PyTorch usage"
    # TODO(synk): the beta == -1 hard-sign branch of forward() is not implemented here.

    beta = float(beta)
    w_half = tuple(float(w) * 0.5 for w in np.asarray(sym_w))
    beta_b = tuple(beta * float(b) for b in np.asarray(sorted_b))

    total = int(np.prod(x.shape))
    M, C = _choose_slab(total, max_lanes=max_lanes)
    total_pad = M * C

    x_flat = x.reshape(-1)
    if total_pad != total:
        x_flat = jnp.pad(x_flat, (0, total_pad - total))   # tiny tail only
    x2 = x_flat.reshape(M, C)

    if M <= block_rows:
        br = M                         # block == full row extent (any M allowed)
        grid = (1,)
    else:
        br = block_rows                # multiple of 8; edge block handled by Pallas
        grid = (pl.cdiv(M, br),)

    kernel = functools.partial(_stanh_kernel, beta=beta, w_half=w_half, beta_b=beta_b)
    out2 = pl.pallas_call(
        kernel,
        out_shape=jax.ShapeDtypeStruct((M, C), x.dtype),
        grid=grid,
        in_specs=[pl.BlockSpec((br, C), lambda i: (i, 0))],
        out_specs=pl.BlockSpec((br, C), lambda i: (i, 0)),
        compiler_params=pltpu.CompilerParams(
            dimension_semantics=("parallel",)),
    )(x2)

    out_flat = out2.reshape(-1)
    if total_pad != total:
        out_flat = out_flat[:total]
    return out_flat.reshape(x.shape)


# ----------------------------------------------------------------------------
# Pure-JAX reference (mirrors the torch broadcasting / sigmoid formula exactly)
# ----------------------------------------------------------------------------
def symstanh_reference(x, sym_w, sorted_b, beta):
    # x: (B, 1, N); b[:, None]: (K, 1) -> broadcast to (B, K, N); sum over dim 1.
    z = beta * (x - sorted_b[:, None])
    f = 2.0 * jax.nn.sigmoid(2.0 * z) - 1.0
    s = jnp.sum(sym_w[:, None] / 2.0 * f, axis=1)
    return s[:, None, :]


if __name__ == "__main__":
    beta = 10.0
    num_sigmoids = 4
    extrema = 5

    sym_w, sorted_b = build_symstanh_params(num_sigmoids, extrema)

    # Small deterministic input consistent with the forward's broadcasting: (B, 1, N)
    key = jax.random.PRNGKey(0)
    B, N = 2, 1024
    x = 3.0 * jax.random.normal(key, (B, 1, N), dtype=jnp.float32)

    out = symstanh_forward(x, sym_w, sorted_b, beta)
    out = jax.block_until_ready(out)

    ref = symstanh_reference(x, jnp.asarray(sym_w), jnp.asarray(sorted_b), beta)
    assert out.shape == (B, 1, N)
    np.testing.assert_allclose(np.asarray(out), np.asarray(ref), rtol=1e-5, atol=1e-5)

    print("KERNEL_OK")
</pallas_src>

<mosaic_0001>
module attributes {stable_mosaic.version = 11 : i64} {
  func.func @_stanh_kernel(%arg0: i32, %arg1: memref<8x256xf32, #tpu.memory_space<vmem>>, %arg2: memref<8x256xf32, #tpu.memory_space<vmem>>) attributes {dimension_semantics = [#tpu.dimension_semantics<parallel>], iteration_bounds = array<i64: 1>, scalar_prefetch = 0 : i64, scratch_operands = 0 : i64, tpu.core_type = #tpu.core_type<tc>, window_params = [{transform_indices = @transform_0, window_bounds = array<i64: 8, 256>}, {transform_indices = @transform_1, window_bounds = array<i64: 8, 256>}]} {
    %c0 = arith.constant 0 : index
    %c0_0 = arith.constant 0 : index
    %0 = vector.load %arg1[%c0, %c0_0] : memref<8x256xf32, #tpu.memory_space<vmem>>, vector<8x256xf32>
    %cst = arith.constant 1.000000e+01 : f32
    %1 = vector.broadcast %cst : f32 to vector<8x256xf32>
    %2 = arith.mulf %1, %0 : vector<8x256xf32>
    %cst_1 = arith.constant -4.375000e+01 : f32
    %3 = vector.broadcast %cst_1 : f32 to vector<8x256xf32>
    %4 = arith.subf %2, %3 : vector<8x256xf32>
    %5 = math.tanh %4 : vector<8x256xf32>
    %cst_2 = arith.constant 6.250000e-01 : f32
    %6 = vector.broadcast %cst_2 : f32 to vector<8x256xf32>
    %7 = arith.mulf %6, %5 : vector<8x256xf32>
    %cst_3 = arith.constant -3.125000e+01 : f32
    %8 = vector.broadcast %cst_3 : f32 to vector<8x256xf32>
    %9 = arith.subf %2, %8 : vector<8x256xf32>
    %10 = math.tanh %9 : vector<8x256xf32>
    %cst_4 = arith.constant 6.250000e-01 : f32
    %11 = vector.broadcast %cst_4 : f32 to vector<8x256xf32>
    %12 = arith.mulf %11, %10 : vector<8x256xf32>
    %13 = arith.addf %7, %12 : vector<8x256xf32>
    %cst_5 = arith.constant -1.875000e+01 : f32
    %14 = vector.broadcast %cst_5 : f32 to vector<8x256xf32>
    %15 = arith.subf %2, %14 : vector<8x256xf32>
    %16 = math.tanh %15 : vector<8x256xf32>
    %cst_6 = arith.constant 6.250000e-01 : f32
    %17 = vector.broadcast %cst_6 : f32 to vector<8x256xf32>
    %18 = arith.mulf %17, %16 : vector<8x256xf32>
    %19 = arith.addf %13, %18 : vector<8x256xf32>
    %cst_7 = arith.constant -6.250000e+00 : f32
    %20 = vector.broadcast %cst_7 : f32 to vector<8x256xf32>
    %21 = arith.subf %2, %20 : vector<8x256xf32>
    %22 = math.tanh %21 : vector<8x256xf32>
    %cst_8 = arith.constant 6.250000e-01 : f32
    %23 = vector.broadcast %cst_8 : f32 to vector<8x256xf32>
    %24 = arith.mulf %23, %22 : vector<8x256xf32>
    %25 = arith.addf %19, %24 : vector<8x256xf32>
    %cst_9 = arith.constant 6.250000e+00 : f32
    %26 = vector.broadcast %cst_9 : f32 to vector<8x256xf32>
    %27 = arith.subf %2, %26 : vector<8x256xf32>
    %28 = math.tanh %27 : vector<8x256xf32>
    %cst_10 = arith.constant 6.250000e-01 : f32
    %29 = vector.broadcast %cst_10 : f32 to vector<8x256xf32>
    %30 = arith.mulf %29, %28 : vector<8x256xf32>
    %31 = arith.addf %25, %30 : vector<8x256xf32>
    %cst_11 = arith.constant 1.875000e+01 : f32
    %32 = vector.broadcast %cst_11 : f32 to vector<8x256xf32>
    %33 = arith.subf %2, %32 : vector<8x256xf32>
    %34 = math.tanh %33 : vector<8x256xf32>
    %cst_12 = arith.constant 6.250000e-01 : f32
    %35 = vector.broadcast %cst_12 : f32 to vector<8x256xf32>
    %36 = arith.mulf %35, %34 : vector<8x256xf32>
    %37 = arith.addf %31, %36 : vector<8x256xf32>
    %cst_13 = arith.constant 3.125000e+01 : f32
    %38 = vector.broadcast %cst_13 : f32 to vector<8x256xf32>
    %39 = arith.subf %2, %38 : vector<8x256xf32>
    %40 = math.tanh %39 : vector<8x256xf32>
    %cst_14 = arith.constant 6.250000e-01 : f32
    %41 = vector.broadcast %cst_14 : f32 to vector<8x256xf32>
    %42 = arith.mulf %41, %40 : vector<8x256xf32>
    %43 = arith.addf %37, %42 : vector<8x256xf32>
    %cst_15 = arith.constant 4.375000e+01 : f32
    %44 = vector.broadcast %cst_15 : f32 to vector<8x256xf32>
    %45 = arith.subf %2, %44 : vector<8x256xf32>
    %46 = math.tanh %45 : vector<8x256xf32>
    %cst_16 = arith.constant 6.250000e-01 : f32
    %47 = vector.broadcast %cst_16 : f32 to vector<8x256xf32>
    %48 = arith.mulf %47, %46 : vector<8x256xf32>
    %49 = arith.addf %43, %48 : vector<8x256xf32>
    %c0_17 = arith.constant 0 : index
    %c0_18 = arith.constant 0 : index
    %50 = vector.load %arg2[%c0_17, %c0_18] : memref<8x256xf32, #tpu.memory_space<vmem>>, vector<8x256xf32>
    tpu.vector_store %arg2[%c0_17, %c0_18], %49 {strides = array<i32>} : memref<8x256xf32, #tpu.memory_space<vmem>>, vector<8x256xf32>,
    return
  }
  func.func @transform_0(%arg0: i32) -> (i32, i32) {
    %c0_i32 = arith.constant 0 : i32
    %c0_i32_0 = arith.constant 0 : i32
    return %arg0, %c0_i32 : i32, i32
  }
  func.func @transform_1(%arg0: i32) -> (i32, i32) {
    %c0_i32 = arith.constant 0 : i32
    %c0_i32_0 = arith.constant 0 : i32
    return %arg0, %c0_i32 : i32, i32
  }
}

</mosaic_0001>

<llo_original>
// kernel: tpu_custom_call.1
$region0: #{tpu_custom_call.1}
  #allocation0 [shape = 'u32[]', space=smem, size = 0x4, offset = 0x4, fixed_abs, tag = 'smem constant byte address 0x4 - core index']
  #allocation1 [shape = 'u32[144,128]{1,0:T(1,128)}', space=vmem, size = 0x12000, scoped, tag = 'internal scratch']
  %s0 = inlined_call_operand.hbm [shape: f32[8,256], index: 0, kind: input, shape index: {}]
  %s1 = inlined_call_operand.hbm [shape: f32[8,256], index: 1, kind: output, shape index: {}]
  %s2 = sld [smem:[#allocation0]]
  $region18: #{tpu_custom_call.1} parent=0
    _
  %s4 = ssub.s32 1, %s2
  %s5 = scalar_select 0, %s4, %s2
  $region1: #{tpu_custom_call.1} parent=0
    #allocation2 [shape = 'u8[8192]{0}', space=vmem, size = 0x2000, scoped, tag = 'input window, operand 0, single buffered']
    #allocation3 [shape = 's32[1]{0}', space=sflag, size = 0x4, scoped, tag = 'scoped memory for tpu_custom_call.1']
    #allocation4 [shape = 's32[1]{0}', space=sflag, size = 0x4, scoped, tag = 'scoped memory for tpu_custom_call.1']
    #allocation5 [shape = 'u8[8192]{0}', space=vmem, size = 0x2000, scoped, tag = 'output window, operand 0, single buffered']
    %6 = vsyncpa [#allocation3], 0
    %7 = vsyncpa [#allocation4], 0
    // Predicated region
    $region2: #{tpu_custom_call.1} parent=1 // pred_check
      _
    $region3: #{tpu_custom_call.1} parent=1 // pred_check_branch
      %9 = sbr.rel (0) target = $region5
    $region4: #{tpu_custom_call.1} parent=1 // pred_region
      %s11 = ssub.s32 256, 256
      %12 = vsyncadd [#allocation3], %s11
      %s14 = sshll.u32 [#allocation2], 4
      %s15 = int_to_ptr.vmem [resolvable:$true] %s14
      %17 = dma.hbm_to_vmem [thread:$0]  %s0, 256, %s15, [#allocation3]
    $region5: #{tpu_custom_call.1} parent=1 // pred_fallthru
      _
    // Predicated region
    $region6: #{tpu_custom_call.1} parent=1 // pred_check
      _
    $region7: #{tpu_custom_call.1} parent=1 // pred_check_branch
      %19 = sbr.rel (0) target = $region9
    $region8: #{tpu_custom_call.1} parent=1 // pred_region
      %20 = dma.done [#allocation3], 256
    $region9: #{tpu_custom_call.1} parent=1 // pred_fallthru
      _
    %v21 = vld [vmem:[#allocation2] sm:$0xff]
    %v22 = vld [vmem:[#allocation2 + $0x8] sm:$0xff]
    %v23 = vmul.f32 %v21, 10.0
    %v24 = vmul.f32 %v22, 10.0
    %v25 = vsub.f32 %v23, -43.75
    %v26 = vsub.f32 %v24, -43.75
    %v27 = vtanh.pop %v25
    %v28 = vtanh.pop %v26
    %v29 = vmul.f32 %v27, 0.625
    %v30 = vmul.f32 %v28, 0.625
    %v31 = vsub.f32 %v23, -31.25
    %v32 = vsub.f32 %v24, -31.25
    %v33 = vtanh.pop %v31
    %v34 = vtanh.pop %v32
    %v35 = vmul.f32 %v33, 0.625
    %v36 = vmul.f32 %v34, 0.625
    %v37 = vadd.f32 %v29, %v35
    %v38 = vadd.f32 %v30, %v36
    %v39 = vsub.f32 %v23, -18.75
    %v40 = vsub.f32 %v24, -18.75
    %v41 = vtanh.pop %v39
    %v42 = vtanh.pop %v40
    %v43 = vmul.f32 %v41, 0.625
    %v44 = vmul.f32 %v42, 0.625
    %v45 = vadd.f32 %v37, %v43
    %v46 = vadd.f32 %v38, %v44
    %v47 = vsub.f32 %v23, -6.25
    %v48 = vsub.f32 %v24, -6.25
    %v49 = vtanh.pop %v47
    %v50 = vtanh.pop %v48
    %v51 = vmul.f32 %v49, 0.625
    %v52 = vmul.f32 %v50, 0.625
    %v53 = vadd.f32 %v45, %v51
    %v54 = vadd.f32 %v46, %v52
    %v55 = vsub.f32 %v23, 6.25
    %v56 = vsub.f32 %v24, 6.25
    %v57 = vtanh.pop %v55
    %v58 = vtanh.pop %v56
    %v59 = vmul.f32 %v57, 0.625
    %v60 = vmul.f32 %v58, 0.625
    %v61 = vadd.f32 %v53, %v59
    %v62 = vadd.f32 %v54, %v60
    %v63 = vsub.f32 %v23, 18.75
    %v64 = vsub.f32 %v24, 18.75
    %v65 = vtanh.pop %v63
    %v66 = vtanh.pop %v64
    %v67 = vmul.f32 %v65, 0.625
    %v68 = vmul.f32 %v66, 0.625
    %v69 = vadd.f32 %v61, %v67
    %v70 = vadd.f32 %v62, %v68
    %v71 = vsub.f32 %v23, 31.25
    %v72 = vsub.f32 %v24, 31.25
    %v73 = vtanh.pop %v71
    %v74 = vtanh.pop %v72
    %v75 = vmul.f32 %v73, 0.625
    %v76 = vmul.f32 %v74, 0.625
    %v77 = vadd.f32 %v69, %v75
    %v78 = vadd.f32 %v70, %v76
    %v79 = vsub.f32 %v23, 43.75
    %v80 = vsub.f32 %v24, 43.75
    %v81 = vtanh.pop %v79
    %v82 = vtanh.pop %v80
    %v83 = vmul.f32 %v81, 0.625
    %v84 = vmul.f32 %v82, 0.625
    %v85 = vadd.f32 %v77, %v83
    %v86 = vadd.f32 %v78, %v84
    %87 = vst [vmem:[#allocation5] sm:$0xff] %v85
    %88 = vst [vmem:[#allocation5 + $0x8] sm:$0xff] %v86
    // Predicated region
    $region10: #{tpu_custom_call.1} parent=1 // pred_check
      _
    $region11: #{tpu_custom_call.1} parent=1 // pred_check_branch
      %90 = sbr.rel (0) target = $region13
    $region12: #{tpu_custom_call.1} parent=1 // pred_region
      %s92 = ssub.s32 256, 256
      %93 = vsyncadd [#allocation4], %s92
      %s95 = sshll.u32 [#allocation5], 4
      %s96 = int_to_ptr.vmem [resolvable:$true] %s95
      %98 = dma.vmem_to_hbm [thread:$0]  %s96, 256, %s1, [#allocation4]
    $region13: #{tpu_custom_call.1} parent=1 // pred_fallthru
      _
    // Predicated region
    $region14: #{tpu_custom_call.1} parent=1 // pred_check
      _
    $region15: #{tpu_custom_call.1} parent=1 // pred_check_branch
      %100 = sbr.rel (0) target = $region17
    $region16: #{tpu_custom_call.1} parent=1 // pred_region
      %101 = dma.done [#allocation4], 256
    $region17: #{tpu_custom_call.1} parent=1 // pred_fallthru
      _
    %102 = vsyncpa [#allocation3], 1
    %103 = vsyncpa [#allocation4], 1

</llo_original>
